<compile_context>
chip_gen: v6e
topology: v6e:2x2x1
jax: 0.10.0
libtpu: 0.0.40
codegen_flags: <defaults>
</compile_context>

<pallas_src>
import functools

import jax
import jax.numpy as jnp
from jax import lax
from jax.experimental import pallas as pl
from jax.experimental.pallas import tpu as pltpu


def _newsvendor_kernel(y_ref, d_ref, lo_ref, hi_ref, out_ref, *,
                       k, c_lin, c_quad, b_lin, b_quad, h_lin, h_quad):
    y = y_ref[...]                  # (k, TB)   scenario weights, batch on lanes
    d = d_ref[...]                  # (k, 1)    demand levels, sorted ascending
    lo = lo_ref[...]                # (k+1, 1)  segment lower bounds [0, d_1, ..., d_k]
    hi = hi_ref[...]                # (k+1, 1)  segment upper bounds [d_1, ..., d_k, BIG]

    # Per-scenario weighted linear-coefficient payloads.
    yb = y * (b_quad * d + b_lin)   # shortage side contribution
    yh = y * (h_lin - h_quad * d)   # holding side contribution

    # Segment/scenario membership masks: segment i covers (d_i, d_{i+1}); scenario j
    # (1-based) is "below" the segment iff j <= i, "above" iff j > i.
    seg = lax.broadcasted_iota(jnp.int32, (k + 1, k), 0)
    sc = lax.broadcasted_iota(jnp.int32, (k + 1, k), 1)
    m_le = (sc < seg).astype(jnp.float32)
    m_gt = (sc >= seg).astype(jnp.float32)

    # All prefix/suffix sums over scenarios for every segment at once (tiny MXU matmuls,
    # no serial per-row loops).
    s_h = jnp.dot(m_le, y, preferred_element_type=jnp.float32)     # (k+1, TB)
    s_b = jnp.dot(m_gt, y, preferred_element_type=jnp.float32)
    c_h = jnp.dot(m_le, yh, preferred_element_type=jnp.float32)
    c_b = jnp.dot(m_gt, yb, preferred_element_type=jnp.float32)

    # On segment i the derivative of the reduced objective is g(z) = a_i*z + b_i
    # (monotone nondecreasing across segments since y >= 0 and costs >= 0).
    a = c_quad + b_quad * s_b + h_quad * s_h                        # (k+1, TB)
    b = c_lin - c_b + c_h                                           # (k+1, TB)

    g_start = a * lo + b            # derivative just right of each segment start
    neg = g_start < 0.0             # objective still descending entering this segment

    root = -b / jnp.maximum(a, 1e-20)
    cand = jnp.clip(root, lo, hi)   # per-segment minimizer

    # Exact global minimizer: the last segment whose start is still descending holds the
    # optimum, and its clipped root dominates all earlier candidates, so a masked max
    # selects it (no candidate descending => z* = 0).
    z_star = jnp.max(jnp.where(neg, cand, 0.0), axis=0, keepdims=True)   # (1, TB)
    out_ref[...] = z_star


def solve_newsvendor(y, params, *, tile_b=128):
    """y: (nBatch, k) scenario weights.  Returns (nBatch, 1) optimal order quantity z0.

    Equivalent to SolveNewsvendor.forward (qpth QPFunction on the scaled QP, returning
    the first coordinate) for nonnegative y and nonnegative cost coefficients.
    """
    d = jnp.asarray(params['d'], jnp.float32).reshape(-1)
    k = int(d.shape[0])
    y = jnp.asarray(y, jnp.float32)
    nbatch, ky = y.shape
    assert ky == k

    # Sort demand levels once; permute scenario weights to match (host-side setup).
    order = jnp.argsort(d)
    d_sorted = d[order]
    y_sorted = y[:, order]

    # Lane-dense packing: batch on lanes, padded to a multiple of tile_b (>=128).
    bpad = ((nbatch + tile_b - 1) // tile_b) * tile_b
    y_t = jnp.zeros((k, bpad), jnp.float32).at[:, :nbatch].set(y_sorted.T)

    d_col = d_sorted.reshape(k, 1)
    lo = jnp.concatenate([jnp.zeros((1, 1), jnp.float32), d_col], axis=0)       # (k+1,1)
    hi = jnp.concatenate([d_col, jnp.full((1, 1), 1e30, jnp.float32)], axis=0)  # (k+1,1)

    kernel = functools.partial(
        _newsvendor_kernel, k=k,
        c_lin=float(params['c_lin']), c_quad=float(params['c_quad']),
        b_lin=float(params['b_lin']), b_quad=float(params['b_quad']),
        h_lin=float(params['h_lin']), h_quad=float(params['h_quad']))

    out = pl.pallas_call(
        kernel,
        out_shape=jax.ShapeDtypeStruct((1, bpad), jnp.float32),
        grid=(bpad // tile_b,),
        in_specs=[
            pl.BlockSpec((k, tile_b), lambda bb: (0, bb)),       # y (batch tile)
            pl.BlockSpec((k, 1), lambda bb: (0, 0)),             # d (grid-invariant)
            pl.BlockSpec((k + 1, 1), lambda bb: (0, 0)),         # segment lower bounds
            pl.BlockSpec((k + 1, 1), lambda bb: (0, 0)),         # segment upper bounds
        ],
        out_specs=pl.BlockSpec((1, tile_b), lambda bb: (0, bb)),
        compiler_params=pltpu.CompilerParams(dimension_semantics=("parallel",)),
    )(y_t, d_col, lo, hi)

    return out[0, :nbatch].reshape(nbatch, 1)


def _reduced_objective(z0, y, d, p):
    # Exact reduced newsvendor objective.  z0: (B, G); y: (B, k); d: (k,).
    z = z0[:, :, None]
    u = jnp.maximum(d[None, None, :] - z, 0.0)
    v = jnp.maximum(z - d[None, None, :], 0.0)
    per = (0.5 * p['b_quad'] * u * u + p['b_lin'] * u
           + 0.5 * p['h_quad'] * v * v + p['h_lin'] * v)
    return (0.5 * p['c_quad'] * z0 ** 2 + p['c_lin'] * z0
            + jnp.einsum('bk,bgk->bg', y, per))


if __name__ == "__main__":
    key = jax.random.PRNGKey(0)
    k = 10
    nbatch = 4
    params = {
        'd': jnp.arange(1.0, k + 1.0, dtype=jnp.float32),
        'c_lin': 10.0, 'b_lin': 30.0, 'h_lin': 10.0,
        'c_quad': 2.0, 'b_quad': 14.0, 'h_quad': 2.0,
    }
    # Scenario probabilities (as produced by the upstream softmax model).
    y = jax.nn.softmax(jax.random.normal(key, (nbatch, k), dtype=jnp.float32), axis=-1)

    z = solve_newsvendor(y, params)
    z = jax.block_until_ready(z)

    assert z.shape == (nbatch, 1)
    assert bool(jnp.all(jnp.isfinite(z)))
    assert bool(jnp.all(z >= -1e-6))

    # Sanity check: the kernel's z0 must be at least as good as a dense grid search on
    # the (exact) reduced objective.
    d = params['d']
    zs = jnp.linspace(0.0, float(jnp.max(d)) * 1.5, 4001)
    f_grid = _reduced_objective(jnp.broadcast_to(zs, (nbatch, zs.shape[0])), y, d, params)
    f_kernel = _reduced_objective(z, y, d, params)[:, 0]
    assert bool(jnp.all(f_kernel <= jnp.min(f_grid, axis=1) + 1e-2))

    # TODO(synk): qpth's general batched interior-point QPFunction has no Pallas
    # equivalent; this kernel uses the exact slack-eliminated closed form, valid for the
    # newsvendor's nonnegative weights/costs (the module's intended regime).
    print("KERNEL_OK")
</pallas_src>

<mosaic_0001>
module attributes {stable_mosaic.version = 11 : i64} {
  func.func @_newsvendor_kernel(%arg0: i32, %arg1: memref<10x128xf32, #tpu.memory_space<vmem>>, %arg2: memref<10x1xf32, #tpu.memory_space<vmem>>, %arg3: memref<11x1xf32, #tpu.memory_space<vmem>>, %arg4: memref<11x1xf32, #tpu.memory_space<vmem>>, %arg5: memref<1x128xf32, #tpu.memory_space<vmem>>) attributes {dimension_semantics = [#tpu.dimension_semantics<parallel>], iteration_bounds = array<i64: 1>, scalar_prefetch = 0 : i64, scratch_operands = 0 : i64, tpu.core_type = #tpu.core_type<tc>, window_params = [{transform_indices = @transform_0, window_bounds = array<i64: 10, 128>}, {pipeline_mode = #tpu.pipeline_mode<synchronous>, transform_indices = @transform_1, window_bounds = array<i64: 10, 1>}, {pipeline_mode = #tpu.pipeline_mode<synchronous>, transform_indices = @transform_2, window_bounds = array<i64: 11, 1>}, {pipeline_mode = #tpu.pipeline_mode<synchronous>, transform_indices = @transform_3, window_bounds = array<i64: 11, 1>}, {transform_indices = @transform_4, window_bounds = array<i64: 1, 128>}]} {
    %c0 = arith.constant 0 : index
    %c0_0 = arith.constant 0 : index
    %0 = vector.load %arg1[%c0, %c0_0] : memref<10x128xf32, #tpu.memory_space<vmem>>, vector<10x128xf32>
    %c0_1 = arith.constant 0 : index
    %c0_2 = arith.constant 0 : index
    %1 = vector.load %arg2[%c0_1, %c0_2] : memref<10x1xf32, #tpu.memory_space<vmem>>, vector<10x1xf32>
    %c0_3 = arith.constant 0 : index
    %c0_4 = arith.constant 0 : index
    %2 = vector.load %arg3[%c0_3, %c0_4] : memref<11x1xf32, #tpu.memory_space<vmem>>, vector<11x1xf32>
    %c0_5 = arith.constant 0 : index
    %c0_6 = arith.constant 0 : index
    %3 = vector.load %arg4[%c0_5, %c0_6] : memref<11x1xf32, #tpu.memory_space<vmem>>, vector<11x1xf32>
    %cst = arith.constant 1.400000e+01 : f32
    %4 = vector.broadcast %cst : f32 to vector<10x1xf32>
    %5 = arith.mulf %4, %1 : vector<10x1xf32>
    %cst_7 = arith.constant 3.000000e+01 : f32
    %6 = vector.broadcast %cst_7 : f32 to vector<10x1xf32>
    %7 = arith.addf %5, %6 : vector<10x1xf32>
    %8 = vector.broadcast %7 : vector<10x1xf32> to vector<10x128xf32>
    %9 = arith.mulf %0, %8 : vector<10x128xf32>
    %cst_8 = arith.constant 2.000000e+00 : f32
    %10 = vector.broadcast %cst_8 : f32 to vector<10x1xf32>
    %11 = arith.mulf %10, %1 : vector<10x1xf32>
    %cst_9 = arith.constant 1.000000e+01 : f32
    %12 = vector.broadcast %cst_9 : f32 to vector<10x1xf32>
    %13 = arith.subf %12, %11 : vector<10x1xf32>
    %14 = vector.broadcast %13 : vector<10x1xf32> to vector<10x128xf32>
    %15 = arith.mulf %0, %14 : vector<10x128xf32>
    %16 = tpu.iota {dimensions = array<i32: 0>} : vector<11x10xi32>
    %17 = tpu.iota {dimensions = array<i32: 1>} : vector<11x10xi32>
    %18 = arith.cmpi slt, %17, %16 : vector<11x10xi32>
    %19 = arith.extui %18 : vector<11x10xi1> to vector<11x10xi32>
    %20 = arith.sitofp %19 : vector<11x10xi32> to vector<11x10xf32>
    %21 = arith.cmpi sge, %17, %16 : vector<11x10xi32>
    %22 = arith.extui %21 : vector<11x10xi1> to vector<11x10xi32>
    %23 = arith.sitofp %22 : vector<11x10xi32> to vector<11x10xf32>
    %cst_10 = arith.constant dense<0.000000e+00> : vector<11x128xf32>
    %24 = tpu.matmul %20, %0, %cst_10 {dimension_numbers = #tpu.dot_dimension_numbers<[1], [0], [0], [1], [0, 0, 1, 1], [], []>} : vector<11x10xf32>, vector<10x128xf32>, vector<11x128xf32> -> vector<11x128xf32>
    %cst_11 = arith.constant dense<0.000000e+00> : vector<11x128xf32>
    %25 = tpu.matmul %23, %0, %cst_11 {dimension_numbers = #tpu.dot_dimension_numbers<[1], [0], [0], [1], [0, 0, 1, 1], [], []>} : vector<11x10xf32>, vector<10x128xf32>, vector<11x128xf32> -> vector<11x128xf32>
    %cst_12 = arith.constant dense<0.000000e+00> : vector<11x128xf32>
    %26 = tpu.matmul %20, %15, %cst_12 {dimension_numbers = #tpu.dot_dimension_numbers<[1], [0], [0], [1], [0, 0, 1, 1], [], []>} : vector<11x10xf32>, vector<10x128xf32>, vector<11x128xf32> -> vector<11x128xf32>
    %cst_13 = arith.constant dense<0.000000e+00> : vector<11x128xf32>
    %27 = tpu.matmul %23, %9, %cst_13 {dimension_numbers = #tpu.dot_dimension_numbers<[1], [0], [0], [1], [0, 0, 1, 1], [], []>} : vector<11x10xf32>, vector<10x128xf32>, vector<11x128xf32> -> vector<11x128xf32>
    %cst_14 = arith.constant 1.400000e+01 : f32
    %28 = vector.broadcast %cst_14 : f32 to vector<11x128xf32>
    %29 = arith.mulf %28, %25 : vector<11x128xf32>
    %cst_15 = arith.constant 2.000000e+00 : f32
    %30 = vector.broadcast %cst_15 : f32 to vector<11x128xf32>
    %31 = arith.addf %30, %29 : vector<11x128xf32>
    %cst_16 = arith.constant 2.000000e+00 : f32
    %32 = vector.broadcast %cst_16 : f32 to vector<11x128xf32>
    %33 = arith.mulf %32, %24 : vector<11x128xf32>
    %34 = arith.addf %31, %33 : vector<11x128xf32>
    %cst_17 = arith.constant 1.000000e+01 : f32
    %35 = vector.broadcast %cst_17 : f32 to vector<11x128xf32>
    %36 = arith.subf %35, %27 : vector<11x128xf32>
    %37 = arith.addf %36, %26 : vector<11x128xf32>
    %38 = vector.broadcast %2 : vector<11x1xf32> to vector<11x128xf32>
    %39 = arith.mulf %34, %38 : vector<11x128xf32>
    %40 = arith.addf %39, %37 : vector<11x128xf32>
    %cst_18 = arith.constant 0.000000e+00 : f32
    %41 = vector.broadcast %cst_18 : f32 to vector<11x128xf32>
    %42 = arith.cmpf olt, %40, %41 : vector<11x128xf32>
    %cst_19 = arith.constant 0.000000e+00 : f32
    %43 = vector.broadcast %cst_19 : f32 to vector<11x128xf32>
    %44 = arith.subf %43, %37 : vector<11x128xf32>
    %cst_20 = arith.constant 9.99999968E-21 : f32
    %45 = vector.broadcast %cst_20 : f32 to vector<11x128xf32>
    %46 = arith.maximumf %34, %45 : vector<11x128xf32>
    %47 = arith.divf %44, %46 : vector<11x128xf32>
    %48 = vector.broadcast %2 : vector<11x1xf32> to vector<11x128xf32>
    %49 = arith.maximumf %48, %47 : vector<11x128xf32>
    %50 = vector.broadcast %3 : vector<11x1xf32> to vector<11x128xf32>
    %51 = arith.minimumf %50, %49 : vector<11x128xf32>
    %cst_21 = arith.constant 0.000000e+00 : f32
    %52 = vector.broadcast %cst_21 : f32 to vector<11x128xf32>
    %53 = arith.select %42, %51, %52 : vector<11x128xi1>, vector<11x128xf32>
    %cst_22 = arith.constant dense<0xFF800000> : vector<128xf32>
    %54 = vector.multi_reduction <maximumf>, %53, %cst_22 [0] : vector<11x128xf32> to vector<128xf32>
    %55 = vector.shape_cast %54 : vector<128xf32> to vector<1x128xf32>
    %c0_23 = arith.constant 0 : index
    %c0_24 = arith.constant 0 : index
    %56 = vector.load %arg5[%c0_23, %c0_24] : memref<1x128xf32, #tpu.memory_space<vmem>>, vector<1x128xf32>
    tpu.vector_store %arg5[%c0_23, %c0_24], %55 {strides = array<i32>} : memref<1x128xf32, #tpu.memory_space<vmem>>, vector<1x128xf32>,
    return
  }
  func.func @transform_0(%arg0: i32) -> (i32, i32) {
    %c0_i32 = arith.constant 0 : i32
    %c0_i32_0 = arith.constant 0 : i32
    return %c0_i32, %arg0 : i32, i32
  }
  func.func @transform_1(%arg0: i32) -> (i32, i32) {
    %c0_i32 = arith.constant 0 : i32
    %c0_i32_0 = arith.constant 0 : i32
    %c0_i32_1 = arith.constant 0 : i32
    return %c0_i32, %c0_i32_0 : i32, i32
  }
  func.func @transform_2(%arg0: i32) -> (i32, i32) {
    %c0_i32 = arith.constant 0 : i32
    %c0_i32_0 = arith.constant 0 : i32
    %c0_i32_1 = arith.constant 0 : i32
    return %c0_i32, %c0_i32_0 : i32, i32
  }
  func.func @transform_3(%arg0: i32) -> (i32, i32) {
    %c0_i32 = arith.constant 0 : i32
    %c0_i32_0 = arith.constant 0 : i32
    %c0_i32_1 = arith.constant 0 : i32
    return %c0_i32, %c0_i32_0 : i32, i32
  }
  func.func @transform_4(%arg0: i32) -> (i32, i32) {
    %c0_i32 = arith.constant 0 : i32
    %c0_i32_0 = arith.constant 0 : i32
    return %c0_i32, %arg0 : i32, i32
  }
}

</mosaic_0001>

<llo_original>
// kernel: tpu_custom_call.1
$region0: #{tpu_custom_call.1}
  #allocation0 [shape = 'u32[]', space=smem, size = 0x4, offset = 0x4, fixed_abs, tag = 'smem constant byte address 0x4 - core index']
  #allocation1 [shape = 'u32[144,128]{1,0:T(1,128)}', space=vmem, size = 0x12000, scoped, tag = 'internal scratch']
  %s0 = inlined_call_operand.vmem [shape: f32[10,128], index: 0, kind: input, shape index: {}]
  %s1 = inlined_call_operand.vmem [shape: f32[10,1], index: 1, kind: input, shape index: {}]
  %s2 = inlined_call_operand.vmem [shape: f32[11,1], index: 2, kind: input, shape index: {}]
  %s3 = inlined_call_operand.vmem [shape: f32[11,1], index: 3, kind: input, shape index: {}]
  %s4 = inlined_call_operand.hbm [shape: f32[1,128], index: 4, kind: output, shape index: {}]
  %s5 = sld [smem:[#allocation0]]
  $region26: #{tpu_custom_call.1} parent=0
    _
  %s7 = ssub.s32 1, %s5
  %s8 = scalar_select 0, %s7, %s5
  $region1: #{tpu_custom_call.1} parent=0
    #allocation2 [shape = 'u8[512]{0}', space=vmem, size = 0x400, scoped, tag = 'output window, operand 0, single buffered']
    #allocation3 [shape = 's32[1]{0}', space=sflag, size = 0x4, scoped, tag = 'scoped memory for tpu_custom_call.1']
    %9 = vsyncpa [#allocation3], 0
    // Predicated region
    $region2: #{tpu_custom_call.1} parent=1 // pred_check
      _
    $region3: #{tpu_custom_call.1} parent=1 // pred_check_branch
      %11 = sbr.rel (0) target = $region5
    $region4: #{tpu_custom_call.1} parent=1 // pred_region
      _
    $region5: #{tpu_custom_call.1} parent=1 // pred_fallthru
      _
    // Predicated region
    $region6: #{tpu_custom_call.1} parent=1 // pred_check
      _
    $region7: #{tpu_custom_call.1} parent=1 // pred_check_branch
      %13 = sbr.rel (0) target = $region9
    $region8: #{tpu_custom_call.1} parent=1 // pred_region
      _
    $region9: #{tpu_custom_call.1} parent=1 // pred_fallthru
      _
    // Predicated region
    $region10: #{tpu_custom_call.1} parent=1 // pred_check
      _
    $region11: #{tpu_custom_call.1} parent=1 // pred_check_branch
      %15 = sbr.rel (0) target = $region13
    $region12: #{tpu_custom_call.1} parent=1 // pred_region
      _
    $region13: #{tpu_custom_call.1} parent=1 // pred_fallthru
      _
    // Predicated region
    $region14: #{tpu_custom_call.1} parent=1 // pred_check
      _
    $region15: #{tpu_custom_call.1} parent=1 // pred_check_branch
      %17 = sbr.rel (0) target = $region17
    $region16: #{tpu_custom_call.1} parent=1 // pred_region
      _
    $region17: #{tpu_custom_call.1} parent=1 // pred_fallthru
      _
    %v18 = vld [vmem:[%s0] sm:$0xff]
    %v19 = vld [vmem:[%s0 + $0x8] sm:$0x3]
    %v20 = vld [vmem:[%s1] sm:$0xff]
    %v21 = vld [vmem:[%s1 + $0x8] sm:$0x3]
    %v22 = vld [vmem:[%s2] sm:$0xff]
    %v23 = vld [vmem:[%s2 + $0x8] sm:$0x7]
    %v24 = vld [vmem:[%s3] sm:$0xff]
    %v25 = vld [vmem:[%s3 + $0x8] sm:$0x7]
    %v26 = vmul.f32 %v20, 14.0
    %v27 = vmul.f32 %v21, 14.0
    %v28 = vadd.f32 %v26, 30.0
    %v29 = vadd.f32 %v27, 30.0
    %31 = vset.pattern.permute.xlu0 0
    %32 = vperm.xlu0 %31, %v28
    %v33 = vpop.permute.xlu0 %32
    %36 = vset.pattern.permute.xlu0 0
    %37 = vperm.xlu0 %36, %v29
    %v38 = vpop.permute.xlu0 %37
    %v40 = vmul.f32 %v18, %v33
    %v41 = vmul.f32 %v19, %v38
    %v42 = vmul.f32 %v20, 2.0
    %v43 = vmul.f32 %v21, 2.0
    %v44 = vsub.f32 10.0, %v42
    %v45 = vsub.f32 10.0, %v43
    %47 = vset.pattern.permute.xlu0 0
    %48 = vperm.xlu0 %47, %v44
    %v49 = vpop.permute.xlu0 %48
    %52 = vset.pattern.permute.xlu0 0
    %53 = vperm.xlu0 %52, %v45
    %v54 = vpop.permute.xlu0 %53
    %v56 = vmul.f32 %v18, %v49
    %v57 = vmul.f32 %v19, %v54
    %v58 = vlaneseq
    %v59 = vshrl.u32 %v58, 7
    %v60 = vadd.s32 %v59, 8
    %v61 = vlaneseq
    %v62 = vand.u32 %v61, 127
    %vm63 = vcmp.lt.s32.totalorder %v62, %v59
    %vm64 = vcmp.lt.s32.totalorder %v62, %v60
    %v65 = vsel %vm63, 1, 0
    %v66 = vsel %vm64, 1, 0
    %v67 = vcvt.s32.f32 %v65
    %v68 = vcvt.s32.f32 %v66
    %vm69 = vcmp.ge.s32.totalorder %v62, %v59
    %vm70 = vcmp.ge.s32.totalorder %v62, %v60
    %v71 = vsel %vm69, 1, 0
    %v72 = vsel %vm70, 1, 0
    %v73 = vcvt.s32.f32 %v71
    %v74 = vcvt.s32.f32 %v72
    %vm75 = vcmask 80896
    %v77 = vsel %vm75, %v67, 0
    %v80 = vsel %vm75, %v68, 0
    %vm82 = vcmask 1041408
    %v84 = vsel %vm82, %v19, 0
    %86 = vmatprep.subr.mxu0 0.0
    %87 = vmatpush1.msra.mxu0 0.0
    %88 = vmatprep.subr.mxu0 0.0
    %89 = vmatpush1.msra.mxu0 0.0
    %90 = vmatprep.subr.mxu0 0.0
    %91 = vmatpush1.msra.mxu0 0.0
    %92 = vmatprep.subr.mxu0 0.0
    %93 = vmatpush1.msra.mxu0 0.0
    %94 = vmatprep.subr.mxu0 0.0
    %95 = vmatpush1.msra.mxu0 0.0
    %96 = vmatprep.subr.mxu0 0.0
    %97 = vmatpush1.msra.mxu0 0.0
    %98 = vmatprep.subr.mxu0 0.0
    %99 = vmatpush1.msra.mxu0 0.0
    %100 = vmatprep.subr.mxu0 0.0
    %101 = vmatpush1.msra.mxu0 0.0
    %102 = vmatprep.subr.mxu0 0.0
    %103 = vmatpush1.msra.mxu0 0.0
    %104 = vmatprep.subr.mxu0 0.0
    %105 = vmatpush1.msra.mxu0 0.0
    %106 = vmatprep.subr.mxu0 0.0
    %107 = vmatpush1.msra.mxu0 0.0
    %108 = vmatprep.subr.mxu0 0.0
    %109 = vmatpush1.msra.mxu0 0.0
    %110 = vmatprep.subr.mxu0 0.0
    %111 = vmatpush1.msra.mxu0 0.0
    %112 = vmatprep.subr.mxu0 0.0
    %113 = vmatpush1.msra.mxu0 0.0
    %114 = vmatprep.subr.mxu0 0.0
    %115 = vmatpush1.msra.mxu0 %v84
    %116 = vmatprep.subr.mxu0 0.0
    %117 = vmatpush1.msra.mxu0 %v18
    %118 = vmatprep.subr.mxu0 0.0
    %119 = vmatpush2.msra.mxu0 0.0
    %120 = vmatprep.subr.mxu0 0.0
    %121 = vmatpush2.msra.mxu0 0.0
    %122 = vmatprep.subr.mxu0 0.0
    %123 = vmatpush2.msra.mxu0 0.0
    %124 = vmatprep.subr.mxu0 0.0
    %125 = vmatpush2.msra.mxu0 0.0
    %126 = vmatprep.subr.mxu0 0.0
    %127 = vmatpush2.msra.mxu0 0.0
    %128 = vmatprep.subr.mxu0 0.0
    %129 = vmatpush2.msra.mxu0 0.0
    %130 = vmatprep.subr.mxu0 0.0
    %131 = vmatpush2.msra.mxu0 0.0
    %132 = vmatprep.subr.mxu0 0.0
    %133 = vmatpush2.msra.mxu0 0.0
    %134 = vmatprep.subr.mxu0 0.0
    %135 = vmatpush2.msra.mxu0 0.0
    %136 = vmatprep.subr.mxu0 0.0
    %137 = vmatpush2.msra.mxu0 0.0
    %138 = vmatprep.subr.mxu0 0.0
    %139 = vmatpush2.msra.mxu0 0.0
    %140 = vmatprep.subr.mxu0 0.0
    %141 = vmatpush2.msra.mxu0 0.0
    %142 = vmatprep.subr.mxu0 0.0
    %143 = vmatpush2.msra.mxu0 0.0
    %144 = vmatprep.subr.mxu0 0.0
    %145 = vmatpush2.msra.mxu0 0.0
    %146 = vmatprep.subr.mxu0 0.0
    %147 = vmatpush2.msra.mxu0 0.0
    %148 = vmatprep.subr.mxu0 0.0
    %149 = vmatpush2.msra.mxu0 0.0
    %150 = vmatprep.mubr.f32.mxu0 0.0
    %151 = vmatmul.mubr.f32.gmra.mxu0 %v77
    %v152 = vpop.f32.mrf.mxu0
    %v153 = vadd.f32 0.0, %v152
    %v154 = vpop.f32.mrf.mxu0
    %155 = vmatprep.mubr.f32.mxu0 0.0
    %156 = vmatmul.mubr.f32.gmra.mxu0 %v80
    %v157 = vpop.f32.mrf.mxu0
    %v158 = vadd.f32 0.0, %v157
    %v159 = vpop.f32.mrf.mxu0
    %160 = vdwg.mxu0
    %v162 = vsel %vm75, %v73, 0
    %v165 = vsel %vm75, %v74, 0
    %167 = vmatprep.subr.mxu0 0.0
    %168 = vmatpush1.msra.mxu0 0.0
    %169 = vmatprep.subr.mxu0 0.0
    %170 = vmatpush1.msra.mxu0 0.0
    %171 = vmatprep.subr.mxu0 0.0
    %172 = vmatpush1.msra.mxu0 0.0
    %173 = vmatprep.subr.mxu0 0.0
    %174 = vmatpush1.msra.mxu0 0.0
    %175 = vmatprep.subr.mxu0 0.0
    %176 = vmatpush1.msra.mxu0 0.0
    %177 = vmatprep.subr.mxu0 0.0
    %178 = vmatpush1.msra.mxu0 0.0
    %179 = vmatprep.subr.mxu0 0.0
    %180 = vmatpush1.msra.mxu0 0.0
    %181 = vmatprep.subr.mxu0 0.0
    %182 = vmatpush1.msra.mxu0 0.0
    %183 = vmatprep.subr.mxu0 0.0
    %184 = vmatpush1.msra.mxu0 0.0
    %185 = vmatprep.subr.mxu0 0.0
    %186 = vmatpush1.msra.mxu0 0.0
    %187 = vmatprep.subr.mxu0 0.0
    %188 = vmatpush1.msra.mxu0 0.0
    %189 = vmatprep.subr.mxu0 0.0
    %190 = vmatpush1.msra.mxu0 0.0
    %191 = vmatprep.subr.mxu0 0.0
    %192 = vmatpush1.msra.mxu0 0.0
    %193 = vmatprep.subr.mxu0 0.0
    %194 = vmatpush1.msra.mxu0 0.0
    %195 = vmatprep.subr.mxu0 0.0
    %196 = vmatpush1.msra.mxu0 %v84
    %197 = vmatprep.subr.mxu0 0.0
    %198 = vmatpush1.msra.mxu0 %v18
    %199 = vmatprep.subr.mxu0 0.0
    %200 = vmatpush2.msra.mxu0 0.0
    %201 = vmatprep.subr.mxu0 0.0
    %202 = vmatpush2.msra.mxu0 0.0
    %203 = vmatprep.subr.mxu0 0.0
    %204 = vmatpush2.msra.mxu0 0.0
    %205 = vmatprep.subr.mxu0 0.0
    %206 = vmatpush2.msra.mxu0 0.0
    %207 = vmatprep.subr.mxu0 0.0
    %208 = vmatpush2.msra.mxu0 0.0
    %209 = vmatprep.subr.mxu0 0.0
    %210 = vmatpush2.msra.mxu0 0.0
    %211 = vmatprep.subr.mxu0 0.0
    %212 = vmatpush2.msra.mxu0 0.0
    %213 = vmatprep.subr.mxu0 0.0
    %214 = vmatpush2.msra.mxu0 0.0
    %215 = vmatprep.subr.mxu0 0.0
    %216 = vmatpush2.msra.mxu0 0.0
    %217 = vmatprep.subr.mxu0 0.0
    %218 = vmatpush2.msra.mxu0 0.0
    %219 = vmatprep.subr.mxu0 0.0
    %220 = vmatpush2.msra.mxu0 0.0
    %221 = vmatprep.subr.mxu0 0.0
    %222 = vmatpush2.msra.mxu0 0.0
    %223 = vmatprep.subr.mxu0 0.0
    %224 = vmatpush2.msra.mxu0 0.0
    %225 = vmatprep.subr.mxu0 0.0
    %226 = vmatpush2.msra.mxu0 0.0
    %227 = vmatprep.subr.mxu0 0.0
    %228 = vmatpush2.msra.mxu0 0.0
    %229 = vmatprep.subr.mxu0 0.0
    %230 = vmatpush2.msra.mxu0 0.0
    %231 = vmatprep.mubr.f32.mxu0 0.0
    %232 = vmatmul.mubr.f32.gmra.mxu0 %v162
    %v233 = vpop.f32.mrf.mxu0
    %v234 = vadd.f32 0.0, %v233
    %v235 = vpop.f32.mrf.mxu0
    %236 = vmatprep.mubr.f32.mxu0 0.0
    %237 = vmatmul.mubr.f32.gmra.mxu0 %v165
    %v238 = vpop.f32.mrf.mxu0
    %v239 = vadd.f32 0.0, %v238
    %v240 = vpop.f32.mrf.mxu0
    %241 = vdwg.mxu0
    %v243 = vsel %vm82, %v57, 0
    %245 = vmatprep.subr.mxu0 0.0
    %246 = vmatpush1.msra.mxu0 0.0
    %247 = vmatprep.subr.mxu0 0.0
    %248 = vmatpush1.msra.mxu0 0.0
    %249 = vmatprep.subr.mxu0 0.0
    %250 = vmatpush1.msra.mxu0 0.0
    %251 = vmatprep.subr.mxu0 0.0
    %252 = vmatpush1.msra.mxu0 0.0
    %253 = vmatprep.subr.mxu0 0.0
    %254 = vmatpush1.msra.mxu0 0.0
    %255 = vmatprep.subr.mxu0 0.0
    %256 = vmatpush1.msra.mxu0 0.0
    %257 = vmatprep.subr.mxu0 0.0
    %258 = vmatpush1.msra.mxu0 0.0
    %259 = vmatprep.subr.mxu0 0.0
    %260 = vmatpush1.msra.mxu0 0.0
    %261 = vmatprep.subr.mxu0 0.0
    %262 = vmatpush1.msra.mxu0 0.0
    %263 = vmatprep.subr.mxu0 0.0
    %264 = vmatpush1.msra.mxu0 0.0
    %265 = vmatprep.subr.mxu0 0.0
    %266 = vmatpush1.msra.mxu0 0.0
    %267 = vmatprep.subr.mxu0 0.0
    %268 = vmatpush1.msra.mxu0 0.0
    %269 = vmatprep.subr.mxu0 0.0
    %270 = vmatpush1.msra.mxu0 0.0
    %271 = vmatprep.subr.mxu0 0.0
    %272 = vmatpush1.msra.mxu0 0.0
    %273 = vmatprep.subr.mxu0 0.0
    %274 = vmatpush1.msra.mxu0 %v243
    %275 = vmatprep.subr.mxu0 0.0
    %276 = vmatpush1.msra.mxu0 %v56
    %277 = vmatprep.subr.mxu0 0.0
    %278 = vmatpush2.msra.mxu0 0.0
    %279 = vmatprep.subr.mxu0 0.0
    %280 = vmatpush2.msra.mxu0 0.0
    %281 = vmatprep.subr.mxu0 0.0
    %282 = vmatpush2.msra.mxu0 0.0
    %283 = vmatprep.subr.mxu0 0.0
    %284 = vmatpush2.msra.mxu0 0.0
    %285 = vmatprep.subr.mxu0 0.0
    %286 = vmatpush2.msra.mxu0 0.0
    %287 = vmatprep.subr.mxu0 0.0
    %288 = vmatpush2.msra.mxu0 0.0
    %289 = vmatprep.subr.mxu0 0.0
    %290 = vmatpush2.msra.mxu0 0.0
    %291 = vmatprep.subr.mxu0 0.0
    %292 = vmatpush2.msra.mxu0 0.0
    %293 = vmatprep.subr.mxu0 0.0
    %294 = vmatpush2.msra.mxu0 0.0
    %295 = vmatprep.subr.mxu0 0.0
    %296 = vmatpush2.msra.mxu0 0.0
    %297 = vmatprep.subr.mxu0 0.0
    %298 = vmatpush2.msra.mxu0 0.0
    %299 = vmatprep.subr.mxu0 0.0
    %300 = vmatpush2.msra.mxu0 0.0
    %301 = vmatprep.subr.mxu0 0.0
    %302 = vmatpush2.msra.mxu0 0.0
    %303 = vmatprep.subr.mxu0 0.0
    %304 = vmatpush2.msra.mxu0 0.0
    %305 = vmatprep.subr.mxu0 0.0
    %306 = vmatpush2.msra.mxu0 0.0
    %307 = vmatprep.subr.mxu0 0.0
    %308 = vmatpush2.msra.mxu0 0.0
    %309 = vmatprep.mubr.f32.mxu0 0.0
    %310 = vmatmul.mubr.f32.gmra.mxu0 %v77
    %v311 = vpop.f32.mrf.mxu0
    %v312 = vadd.f32 0.0, %v311
    %v313 = vpop.f32.mrf.mxu0
    %314 = vmatprep.mubr.f32.mxu0 0.0
    %315 = vmatmul.mubr.f32.gmra.mxu0 %v80
    %v316 = vpop.f32.mrf.mxu0
    %v317 = vadd.f32 0.0, %v316
    %v318 = vpop.f32.mrf.mxu0
    %319 = vdwg.mxu0
    %v321 = vsel %vm82, %v41, 0
    %323 = vmatprep.subr.mxu0 0.0
    %324 = vmatpush1.msra.mxu0 0.0
    %325 = vmatprep.subr.mxu0 0.0
    %326 = vmatpush1.msra.mxu0 0.0
    %327 = vmatprep.subr.mxu0 0.0
    %328 = vmatpush1.msra.mxu0 0.0
    %329 = vmatprep.subr.mxu0 0.0
    %330 = vmatpush1.msra.mxu0 0.0
    %331 = vmatprep.subr.mxu0 0.0
    %332 = vmatpush1.msra.mxu0 0.0
    %333 = vmatprep.subr.mxu0 0.0
    %334 = vmatpush1.msra.mxu0 0.0
    %335 = vmatprep.subr.mxu0 0.0
    %336 = vmatpush1.msra.mxu0 0.0
    %337 = vmatprep.subr.mxu0 0.0
    %338 = vmatpush1.msra.mxu0 0.0
    %339 = vmatprep.subr.mxu0 0.0
    %340 = vmatpush1.msra.mxu0 0.0
    %341 = vmatprep.subr.mxu0 0.0
    %342 = vmatpush1.msra.mxu0 0.0
    %343 = vmatprep.subr.mxu0 0.0
    %344 = vmatpush1.msra.mxu0 0.0
    %345 = vmatprep.subr.mxu0 0.0
    %346 = vmatpush1.msra.mxu0 0.0
    %347 = vmatprep.subr.mxu0 0.0
    %348 = vmatpush1.msra.mxu0 0.0
    %349 = vmatprep.subr.mxu0 0.0
    %350 = vmatpush1.msra.mxu0 0.0
    %351 = vmatprep.subr.mxu0 0.0
    %352 = vmatpush1.msra.mxu0 %v321
    %353 = vmatprep.subr.mxu0 0.0
    %354 = vmatpush1.msra.mxu0 %v40
    %355 = vmatprep.subr.mxu0 0.0
    %356 = vmatpush2.msra.mxu0 0.0
    %357 = vmatprep.subr.mxu0 0.0
    %358 = vmatpush2.msra.mxu0 0.0
    %359 = vmatprep.subr.mxu0 0.0
    %360 = vmatpush2.msra.mxu0 0.0
    %361 = vmatprep.subr.mxu0 0.0
    %362 = vmatpush2.msra.mxu0 0.0
    %363 = vmatprep.subr.mxu0 0.0
    %364 = vmatpush2.msra.mxu0 0.0
    %365 = vmatprep.subr.mxu0 0.0
    %366 = vmatpush2.msra.mxu0 0.0
    %367 = vmatprep.subr.mxu0 0.0
    %368 = vmatpush2.msra.mxu0 0.0
    %369 = vmatprep.subr.mxu0 0.0
    %370 = vmatpush2.msra.mxu0 0.0
    %371 = vmatprep.subr.mxu0 0.0
    %372 = vmatpush2.msra.mxu0 0.0
    %373 = vmatprep.subr.mxu0 0.0
    %374 = vmatpush2.msra.mxu0 0.0
    %375 = vmatprep.subr.mxu0 0.0
    %376 = vmatpush2.msra.mxu0 0.0
    %377 = vmatprep.subr.mxu0 0.0
    %378 = vmatpush2.msra.mxu0 0.0
    %379 = vmatprep.subr.mxu0 0.0
    %380 = vmatpush2.msra.mxu0 0.0
    %381 = vmatprep.subr.mxu0 0.0
    %382 = vmatpush2.msra.mxu0 0.0
    %383 = vmatprep.subr.mxu0 0.0
    %384 = vmatpush2.msra.mxu0 0.0
    %385 = vmatprep.subr.mxu0 0.0
    %386 = vmatpush2.msra.mxu0 0.0
    %387 = vmatprep.mubr.f32.mxu0 0.0
    %388 = vmatmul.mubr.f32.gmra.mxu0 %v162
    %v389 = vpop.f32.mrf.mxu0
    %v390 = vadd.f32 0.0, %v389
    %v391 = vpop.f32.mrf.mxu0
    %392 = vmatprep.mubr.f32.mxu0 0.0
    %393 = vmatmul.mubr.f32.gmra.mxu0 %v165
    %v394 = vpop.f32.mrf.mxu0
    %v395 = vadd.f32 0.0, %v394
    %v396 = vpop.f32.mrf.mxu0
    %397 = vdwg.mxu0
    %v398 = vmul.f32 %v234, 14.0
    %v399 = vmul.f32 %v239, 14.0
    %v400 = vadd.f32 %v398, 2.0
    %v401 = vadd.f32 %v399, 2.0
    %v402 = vmul.f32 %v153, 2.0
    %v403 = vmul.f32 %v158, 2.0
    %v404 = vadd.f32 %v400, %v402
    %v405 = vadd.f32 %v401, %v403
    %v406 = vsub.f32 10.0, %v390
    %v407 = vsub.f32 10.0, %v395
    %v408 = vadd.f32 %v406, %v312
    %v409 = vadd.f32 %v407, %v317
    %411 = vset.pattern.permute.xlu0 0
    %412 = vperm.xlu0 %411, %v22
    %v413 = vpop.permute.xlu0 %412
    %416 = vset.pattern.permute.xlu0 0
    %417 = vperm.xlu0 %416, %v23
    %v418 = vpop.permute.xlu0 %417
    %v420 = vmul.f32 %v404, %v413
    %v421 = vmul.f32 %v405, %v418
    %v422 = vadd.f32 %v420, %v408
    %v423 = vadd.f32 %v421, %v409
    %vm424 = vcmp.lt.f32.partialorder %v422, 0.0
    %vm425 = vcmp.lt.f32.partialorder %v423, 0.0
    %v426 = vsub.f32 0.0, %v408
    %v427 = vsub.f32 0.0, %v409
    %v428 = vmax.f32 %v404, 1e-20
    %v429 = vmax.f32 %v405, 1e-20
    %v430 = vrcp.pop %v428
    %v431 = vmul.f32 %v426, %v430
    %v432 = vrcp.pop %v429
    %v433 = vmul.f32 %v427, %v432
    %v434 = vmax.f32 %v413, %v431
    %v435 = vmax.f32 %v418, %v433
    %437 = vset.pattern.permute.xlu0 0
    %438 = vperm.xlu0 %437, %v24
    %v439 = vpop.permute.xlu0 %438
    %442 = vset.pattern.permute.xlu0 0
    %443 = vperm.xlu0 %442, %v25
    %v444 = vpop.permute.xlu0 %443
    %v446 = vmin.f32 %v439, %v434
    %v447 = vmin.f32 %v444, %v435
    %v448 = vsel %vm424, %v446, 0.0
    %v449 = vsel %vm425, %v447, 0.0
    %vm450 = vcmask 1042432
    %v451 = vsel %vm450, %v449, -inf
    %v452 = vmax.f32 %v448, %v451
    %v453 = vrot.slane %v452, 4
    %v454 = vmax.f32 %v452, %v453
    %v455 = vrot.slane %v454, 2
    %v456 = vmax.f32 %v454, %v455
    %v457 = vrot.slane %v456, 1
    %v458 = vmax.f32 %v456, %v457
    %459 = vst [vmem:[#allocation2] sm:$0x1] %v458
    // Predicated region
    $region18: #{tpu_custom_call.1} parent=1 // pred_check
      _
    $region19: #{tpu_custom_call.1} parent=1 // pred_check_branch
      %461 = sbr.rel (0) target = $region21
    $region20: #{tpu_custom_call.1} parent=1 // pred_region
      %s463 = ssub.s32 16, 16
      %464 = vsyncadd [#allocation3], %s463
      %s466 = sshll.u32 [#allocation2], 4
      %s467 = int_to_ptr.vmem [resolvable:$true] %s466
      %469 = dma.vmem_to_hbm [thread:$0]  %s467, 16, %s4, [#allocation3]
    $region21: #{tpu_custom_call.1} parent=1 // pred_fallthru
      _
    // Predicated region
    $region22: #{tpu_custom_call.1} parent=1 // pred_check
      _
    $region23: #{tpu_custom_call.1} parent=1 // pred_check_branch
      %471 = sbr.rel (0) target = $region25
    $region24: #{tpu_custom_call.1} parent=1 // pred_region
      %472 = dma.done [#allocation3], 16
    $region25: #{tpu_custom_call.1} parent=1 // pred_fallthru
      _
    %473 = vsyncpa [#allocation3], 1

</llo_original>
